<compile_context>
chip_gen: v7x
topology: tpu7x:2x2x1
jax: 0.10.0
libtpu: 0.0.40
codegen_flags: <defaults>
</compile_context>

<pallas_src>
import functools

import jax
import jax.numpy as jnp
import numpy as np
from jax.experimental import pallas as pl
from jax.experimental.pallas import tpu as pltpu


def _cumulator_kernel(
    x_ref,
    sh1_ref, b1_ref, ta1_ref,
    sh2_ref, b2_ref, ta2_ref,
    sh3_ref, b3_ref, ta3_ref,
    sh4_ref, b4_ref,
    o_ref,
):
    x = x_ref[...].astype(jnp.float32)

    def f_k(x, sh_ref, b_ref, ta_ref):
        # softplus(H) and tanh(a) were precomputed in the wrapper (per-channel).
        y = sh_ref[...] * x + b_ref[...]        # (rows,1) broadcast over lanes
        return y + ta_ref[...] * jnp.tanh(y)

    x = f_k(x, sh1_ref, b1_ref, ta1_ref)
    x = f_k(x, sh2_ref, b2_ref, ta2_ref)
    x = f_k(x, sh3_ref, b3_ref, ta3_ref)

    # final F_k: sigmoid(softplus(H)*X + b)
    out = jax.nn.sigmoid(sh4_ref[...] * x + b4_ref[...])
    o_ref[...] = out.astype(o_ref.dtype)


def _pick_lane_tile(m_pad, tm_max):
    """Largest multiple of 128 that divides m_pad and is <= tm_max."""
    for cand in range(max(tm_max // 128, 1), 0, -1):
        t = cand * 128
        if m_pad % t == 0:
            return t
    return 128


def _pick_row_tile(rows, row_max):
    """Multiple of 8 dividing rows (<= row_max), or the full row dim (exempt)."""
    if rows % 8 != 0:
        return rows
    for cand in range(max(min(rows, row_max) // 8, 1), 0, -1):
        t = cand * 8
        if rows % t == 0:
            return t
    return rows


@functools.partial(jax.jit, static_argnames=("tm_max", "row_max"))
def cumulator_forward(x_nchw, params, tm_max=2048, row_max=256):
    """x_nchw: (N, C, H, W); params: dict of (C,)-shaped per-channel params."""
    N, C, H, W = x_nchw.shape
    R = N * C
    M = H * W

    # free contiguous view -- no transpose, no extra HBM pass
    x2d = x_nchw.reshape(R, M)

    # lane tiling: avoid jnp.pad whenever possible
    if M % 128 == 0:
        m_pad = M
        lane_tile = _pick_lane_tile(m_pad, tm_max)
    elif M <= tm_max:
        m_pad = M
        lane_tile = M                      # full last dim -> exempt from 128 rule
    else:
        m_pad = ((M + 127) // 128) * 128   # rare ragged case: one padding pass
        lane_tile = _pick_lane_tile(m_pad, tm_max)
        x2d = jnp.pad(x2d, ((0, 0), (0, m_pad - M)))

    row_tile = _pick_row_tile(R, row_max)

    grid_r = R // row_tile
    grid_m = m_pad // lane_tile
    # keep >= 2 grid steps so v7x can shard "parallel" axes across its 2 TCs
    if grid_r * grid_m < 2 and lane_tile % 256 == 0:
        lane_tile //= 2
        grid_m = m_pad // lane_tile

    # per-channel params: hoist loop-invariant transcendentals to the wrapper
    # ((C,)-sized work), then tile to one value per (batch, channel) row.
    def col(v):
        return jnp.tile(v.astype(jnp.float32), N).reshape(R, 1)

    p = params
    pcols = [
        col(jax.nn.softplus(p["h1"])), col(p["b1"]), col(jnp.tanh(p["a1"])),
        col(jax.nn.softplus(p["h2"])), col(p["b2"]), col(jnp.tanh(p["a2"])),
        col(jax.nn.softplus(p["h3"])), col(p["b3"]), col(jnp.tanh(p["a3"])),
        col(jax.nn.softplus(p["h4"])), col(p["b4"]),
    ]

    x_spec = pl.BlockSpec((row_tile, lane_tile), lambda r, m: (r, m))
    p_spec = pl.BlockSpec((row_tile, 1), lambda r, m: (r, 0))

    out2d = pl.pallas_call(
        _cumulator_kernel,
        out_shape=jax.ShapeDtypeStruct((R, m_pad), x_nchw.dtype),
        grid_spec=pltpu.PrefetchScalarGridSpec(
            num_scalar_prefetch=0,
            grid=(grid_r, grid_m),
            in_specs=[x_spec] + [p_spec] * 11,
            out_specs=x_spec,
        ),
        compiler_params=pltpu.CompilerParams(
            dimension_semantics=("parallel", "parallel")),
    )(x2d, *pcols)

    if m_pad != M:
        out2d = out2d[:, :M]
    # (N*C, H*W) -> (N, C, H, W) is a free reshape (no transpose)
    return out2d.reshape(N, C, H, W)


def _reference_forward(x_nchw, params):
    """Pure-JAX reference matching the PyTorch module exactly."""
    def bc(v):  # (C,) -> (1, C, 1, 1)
        return v.reshape(1, -1, 1, 1).astype(jnp.float32)

    x = x_nchw.astype(jnp.float32)

    def f_k(x, h, b, a):
        y = jax.nn.softplus(bc(h)) * x + bc(b)
        return y + jnp.tanh(bc(a)) * jnp.tanh(y)

    x = f_k(x, params["h1"], params["b1"], params["a1"])
    x = f_k(x, params["h2"], params["b2"], params["a2"])
    x = f_k(x, params["h3"], params["b3"], params["a3"])
    return jax.nn.sigmoid(jax.nn.softplus(bc(params["h4"])) * x + bc(params["b4"]))


if __name__ == "__main__":
    N, C, H, W = 2, 4, 16, 16
    key = jax.random.PRNGKey(0)
    keys = jax.random.split(key, 12)

    x = jax.random.normal(keys[0], (N, C, H, W), dtype=jnp.float32)

    # deterministic parameter init: N(0, 0.01) per channel, as in the module's __init__
    names = ["h1", "b1", "a1", "h2", "b2", "a2", "h3", "b3", "a3", "h4", "b4"]
    params = {
        name: 0.01 * jax.random.normal(k, (C,), dtype=jnp.float32)
        for name, k in zip(names, keys[1:])
    }

    out = cumulator_forward(x, params)
    out = jax.block_until_ready(out)

    ref = _reference_forward(x, params)
    np.testing.assert_allclose(np.asarray(out), np.asarray(ref), rtol=1e-5, atol=1e-5)

    print("KERNEL_OK")
</pallas_src>

<mosaic_0001>
module attributes {stable_mosaic.version = 11 : i64} {
  func.func @_cumulator_kernel(%arg0: i32, %arg1: i32, %arg2: memref<8x128xf32, #tpu.memory_space<vmem>>, %arg3: memref<8x1xf32, #tpu.memory_space<vmem>>, %arg4: memref<8x1xf32, #tpu.memory_space<vmem>>, %arg5: memref<8x1xf32, #tpu.memory_space<vmem>>, %arg6: memref<8x1xf32, #tpu.memory_space<vmem>>, %arg7: memref<8x1xf32, #tpu.memory_space<vmem>>, %arg8: memref<8x1xf32, #tpu.memory_space<vmem>>, %arg9: memref<8x1xf32, #tpu.memory_space<vmem>>, %arg10: memref<8x1xf32, #tpu.memory_space<vmem>>, %arg11: memref<8x1xf32, #tpu.memory_space<vmem>>, %arg12: memref<8x1xf32, #tpu.memory_space<vmem>>, %arg13: memref<8x1xf32, #tpu.memory_space<vmem>>, %arg14: memref<8x128xf32, #tpu.memory_space<vmem>>) attributes {dimension_semantics = [#tpu.dimension_semantics<parallel>, #tpu.dimension_semantics<parallel>], iteration_bounds = array<i64: 1, 2>, scalar_prefetch = 0 : i64, scratch_operands = 0 : i64, tpu.core_type = #tpu.core_type<tc>, window_params = [{transform_indices = @transform_0, window_bounds = array<i64: 8, 128>}, {transform_indices = @transform_1, window_bounds = array<i64: 8, 1>}, {transform_indices = @transform_2, window_bounds = array<i64: 8, 1>}, {transform_indices = @transform_3, window_bounds = array<i64: 8, 1>}, {transform_indices = @transform_4, window_bounds = array<i64: 8, 1>}, {transform_indices = @transform_5, window_bounds = array<i64: 8, 1>}, {transform_indices = @transform_6, window_bounds = array<i64: 8, 1>}, {transform_indices = @transform_7, window_bounds = array<i64: 8, 1>}, {transform_indices = @transform_8, window_bounds = array<i64: 8, 1>}, {transform_indices = @transform_9, window_bounds = array<i64: 8, 1>}, {transform_indices = @transform_10, window_bounds = array<i64: 8, 1>}, {transform_indices = @transform_11, window_bounds = array<i64: 8, 1>}, {transform_indices = @transform_12, window_bounds = array<i64: 8, 128>}]} {
    %c0 = arith.constant 0 : index
    %c0_0 = arith.constant 0 : index
    %0 = vector.load %arg2[%c0, %c0_0] : memref<8x128xf32, #tpu.memory_space<vmem>>, vector<8x128xf32>
    %c0_1 = arith.constant 0 : index
    %c0_2 = arith.constant 0 : index
    %1 = vector.load %arg3[%c0_1, %c0_2] : memref<8x1xf32, #tpu.memory_space<vmem>>, vector<8x1xf32>
    %2 = vector.broadcast %1 : vector<8x1xf32> to vector<8x128xf32>
    %3 = arith.mulf %2, %0 : vector<8x128xf32>
    %c0_3 = arith.constant 0 : index
    %c0_4 = arith.constant 0 : index
    %4 = vector.load %arg4[%c0_3, %c0_4] : memref<8x1xf32, #tpu.memory_space<vmem>>, vector<8x1xf32>
    %5 = vector.broadcast %4 : vector<8x1xf32> to vector<8x128xf32>
    %6 = arith.addf %3, %5 : vector<8x128xf32>
    %c0_5 = arith.constant 0 : index
    %c0_6 = arith.constant 0 : index
    %7 = vector.load %arg5[%c0_5, %c0_6] : memref<8x1xf32, #tpu.memory_space<vmem>>, vector<8x1xf32>
    %8 = math.tanh %6 : vector<8x128xf32>
    %9 = vector.broadcast %7 : vector<8x1xf32> to vector<8x128xf32>
    %10 = arith.mulf %9, %8 : vector<8x128xf32>
    %11 = arith.addf %6, %10 : vector<8x128xf32>
    %c0_7 = arith.constant 0 : index
    %c0_8 = arith.constant 0 : index
    %12 = vector.load %arg6[%c0_7, %c0_8] : memref<8x1xf32, #tpu.memory_space<vmem>>, vector<8x1xf32>
    %13 = vector.broadcast %12 : vector<8x1xf32> to vector<8x128xf32>
    %14 = arith.mulf %13, %11 : vector<8x128xf32>
    %c0_9 = arith.constant 0 : index
    %c0_10 = arith.constant 0 : index
    %15 = vector.load %arg7[%c0_9, %c0_10] : memref<8x1xf32, #tpu.memory_space<vmem>>, vector<8x1xf32>
    %16 = vector.broadcast %15 : vector<8x1xf32> to vector<8x128xf32>
    %17 = arith.addf %14, %16 : vector<8x128xf32>
    %c0_11 = arith.constant 0 : index
    %c0_12 = arith.constant 0 : index
    %18 = vector.load %arg8[%c0_11, %c0_12] : memref<8x1xf32, #tpu.memory_space<vmem>>, vector<8x1xf32>
    %19 = math.tanh %17 : vector<8x128xf32>
    %20 = vector.broadcast %18 : vector<8x1xf32> to vector<8x128xf32>
    %21 = arith.mulf %20, %19 : vector<8x128xf32>
    %22 = arith.addf %17, %21 : vector<8x128xf32>
    %c0_13 = arith.constant 0 : index
    %c0_14 = arith.constant 0 : index
    %23 = vector.load %arg9[%c0_13, %c0_14] : memref<8x1xf32, #tpu.memory_space<vmem>>, vector<8x1xf32>
    %24 = vector.broadcast %23 : vector<8x1xf32> to vector<8x128xf32>
    %25 = arith.mulf %24, %22 : vector<8x128xf32>
    %c0_15 = arith.constant 0 : index
    %c0_16 = arith.constant 0 : index
    %26 = vector.load %arg10[%c0_15, %c0_16] : memref<8x1xf32, #tpu.memory_space<vmem>>, vector<8x1xf32>
    %27 = vector.broadcast %26 : vector<8x1xf32> to vector<8x128xf32>
    %28 = arith.addf %25, %27 : vector<8x128xf32>
    %c0_17 = arith.constant 0 : index
    %c0_18 = arith.constant 0 : index
    %29 = vector.load %arg11[%c0_17, %c0_18] : memref<8x1xf32, #tpu.memory_space<vmem>>, vector<8x1xf32>
    %30 = math.tanh %28 : vector<8x128xf32>
    %31 = vector.broadcast %29 : vector<8x1xf32> to vector<8x128xf32>
    %32 = arith.mulf %31, %30 : vector<8x128xf32>
    %33 = arith.addf %28, %32 : vector<8x128xf32>
    %c0_19 = arith.constant 0 : index
    %c0_20 = arith.constant 0 : index
    %34 = vector.load %arg12[%c0_19, %c0_20] : memref<8x1xf32, #tpu.memory_space<vmem>>, vector<8x1xf32>
    %35 = vector.broadcast %34 : vector<8x1xf32> to vector<8x128xf32>
    %36 = arith.mulf %35, %33 : vector<8x128xf32>
    %c0_21 = arith.constant 0 : index
    %c0_22 = arith.constant 0 : index
    %37 = vector.load %arg13[%c0_21, %c0_22] : memref<8x1xf32, #tpu.memory_space<vmem>>, vector<8x1xf32>
    %38 = vector.broadcast %37 : vector<8x1xf32> to vector<8x128xf32>
    %39 = arith.addf %36, %38 : vector<8x128xf32>
    %40 = arith.negf %39 : vector<8x128xf32>
    %41 = math.exp %40 : vector<8x128xf32>
    %cst = arith.constant 1.000000e+00 : f32
    %42 = vector.broadcast %cst : f32 to vector<8x128xf32>
    %43 = arith.addf %42, %41 : vector<8x128xf32>
    %44 = arith.divf %42, %43 : vector<8x128xf32>
    %c0_23 = arith.constant 0 : index
    %c0_24 = arith.constant 0 : index
    %45 = vector.load %arg14[%c0_23, %c0_24] : memref<8x128xf32, #tpu.memory_space<vmem>>, vector<8x128xf32>
    tpu.vector_store %arg14[%c0_23, %c0_24], %44 {strides = array<i32>} : memref<8x128xf32, #tpu.memory_space<vmem>>, vector<8x128xf32>,
    return
  }
  func.func @transform_0(%arg0: i32, %arg1: i32) -> (i32, i32) {
    %c0_i32 = arith.constant 0 : i32
    return %arg0, %arg1 : i32, i32
  }
  func.func @transform_1(%arg0: i32, %arg1: i32) -> (i32, i32) {
    %c0_i32 = arith.constant 0 : i32
    %c0_i32_0 = arith.constant 0 : i32
    return %arg0, %c0_i32 : i32, i32
  }
  func.func @transform_2(%arg0: i32, %arg1: i32) -> (i32, i32) {
    %c0_i32 = arith.constant 0 : i32
    %c0_i32_0 = arith.constant 0 : i32
    return %arg0, %c0_i32 : i32, i32
  }
  func.func @transform_3(%arg0: i32, %arg1: i32) -> (i32, i32) {
    %c0_i32 = arith.constant 0 : i32
    %c0_i32_0 = arith.constant 0 : i32
    return %arg0, %c0_i32 : i32, i32
  }
  func.func @transform_4(%arg0: i32, %arg1: i32) -> (i32, i32) {
    %c0_i32 = arith.constant 0 : i32
    %c0_i32_0 = arith.constant 0 : i32
    return %arg0, %c0_i32 : i32, i32
  }
  func.func @transform_5(%arg0: i32, %arg1: i32) -> (i32, i32) {
    %c0_i32 = arith.constant 0 : i32
    %c0_i32_0 = arith.constant 0 : i32
    return %arg0, %c0_i32 : i32, i32
  }
  func.func @transform_6(%arg0: i32, %arg1: i32) -> (i32, i32) {
    %c0_i32 = arith.constant 0 : i32
    %c0_i32_0 = arith.constant 0 : i32
    return %arg0, %c0_i32 : i32, i32
  }
  func.func @transform_7(%arg0: i32, %arg1: i32) -> (i32, i32) {
    %c0_i32 = arith.constant 0 : i32
    %c0_i32_0 = arith.constant 0 : i32
    return %arg0, %c0_i32 : i32, i32
  }
  func.func @transform_8(%arg0: i32, %arg1: i32) -> (i32, i32) {
    %c0_i32 = arith.constant 0 : i32
    %c0_i32_0 = arith.constant 0 : i32
    return %arg0, %c0_i32 : i32, i32
  }
  func.func @transform_9(%arg0: i32, %arg1: i32) -> (i32, i32) {
    %c0_i32 = arith.constant 0 : i32
    %c0_i32_0 = arith.constant 0 : i32
    return %arg0, %c0_i32 : i32, i32
  }
  func.func @transform_10(%arg0: i32, %arg1: i32) -> (i32, i32) {
    %c0_i32 = arith.constant 0 : i32
    %c0_i32_0 = arith.constant 0 : i32
    return %arg0, %c0_i32 : i32, i32
  }
  func.func @transform_11(%arg0: i32, %arg1: i32) -> (i32, i32) {
    %c0_i32 = arith.constant 0 : i32
    %c0_i32_0 = arith.constant 0 : i32
    return %arg0, %c0_i32 : i32, i32
  }
  func.func @transform_12(%arg0: i32, %arg1: i32) -> (i32, i32) {
    %c0_i32 = arith.constant 0 : i32
    return %arg0, %arg1 : i32, i32
  }
}

</mosaic_0001>

<llo_original>
// kernel: tile.68
$region0: #{tile.68}
  #allocation0 [shape = 's32[1]{0}', space=sflag, size = 0x4, scoped, tag = 'scoped memory for tile.68']
  %s0 = inlined_call_operand.vmem [shape: f32[4], index: 0, kind: input, shape index: {}]
  %s1 = inlined_call_operand.vmem [shape: f32[2,4], index: 1, kind: output, shape index: {}]
  // Predicated region
  $region2: #{tile.68} parent=0 // pred_check
    _
  $region3: #{tile.68} parent=0 // pred_check_branch
    %3 = sbr.rel (0) target = $region5
  $region4: #{tile.68} parent=0 // pred_region
    _
  $region5: #{tile.68} parent=0 // pred_fallthru
    _
  %v4 = vld [vmem:[%s0] ss:$0 sm:$0xff]
  %5 = vst [vmem:[%s1] sm:$0x3] %v4

// kernel: tile.10
$region0: #{tile.10}
  %s0 = inlined_call_operand.vmem [shape: f32[2,4], index: 0, kind: input, shape index: {}]
  %s1 = inlined_call_operand.vmem [shape: f32[8,1], index: 1, kind: output, shape index: {}]
  $region1: #{tile.10} parent=0
    #allocation0 [shape = 'u8[4096]{0}', space=vmem, size = 0x1000, scoped, tag = 'scoped mem for input reshape']
    %s3 = sshllo.u32 0, 2
    %v4 = vld [vmem:[%s0] sm:%s3]
    %5 = vst [vmem:[#allocation0] sm:%s3] %v4
    %v6 = vld [vmem:[#allocation0] sm:$0x3]
    %vm7 = vcmask 7168
    %8 = vst.msk [vmem:[%s1] ss:$4 sm:$0x3] %vm7, %v6
    %v9 = vld [vmem:[#allocation0] sm:$0x3]
    %10 = vrot.lane.b32.xlu0 %v9, 127
    %v11 = vpop.permute.xlu0 %10
    %vm12 = vcmask 7168
    %s13 = scalar_lea.vmem %s1, 1
    %14 = vst.msk [vmem:[%s13] ss:$4 sm:$0x3] %vm12, %v11
    %v15 = vld [vmem:[#allocation0] sm:$0x3]
    %16 = vrot.lane.b32.xlu0 %v15, 126
    %v17 = vpop.permute.xlu0 %16
    %vm18 = vcmask 7168
    %s19 = scalar_lea.vmem %s1, 2
    %20 = vst.msk [vmem:[%s19] ss:$4 sm:$0x3] %vm18, %v17
    %v21 = vld [vmem:[#allocation0] sm:$0x3]
    %22 = vrot.lane.b32.xlu0 %v21, 125
    %v23 = vpop.permute.xlu0 %22
    %vm24 = vcmask 7168
    %s25 = scalar_lea.vmem %s1, 3
    %26 = vst.msk [vmem:[%s25] ss:$4 sm:$0x3] %vm24, %v23

// kernel: cumulator_forward.1
$region0: #{cumulator_forward.1}
  #allocation0 [shape = 'u32[]', space=smem, size = 0x4, offset = 0x4, fixed_abs, tag = 'smem constant byte address 0x4 - core index']
  #allocation1 [shape = 'u32[144,128]{1,0:T(1,128)}', space=vmem, size = 0x12000, scoped, tag = 'internal scratch']
  %s0 = inlined_call_operand.vmem [shape: f32[8,256], index: 0, kind: input, shape index: {}]
  %s1 = inlined_call_operand.vmem [shape: f32[8,1], index: 1, kind: input, shape index: {}]
  %s2 = inlined_call_operand.vmem [shape: f32[8,1], index: 2, kind: input, shape index: {}]
  %s3 = inlined_call_operand.vmem [shape: f32[8,1], index: 3, kind: input, shape index: {}]
  %s4 = inlined_call_operand.vmem [shape: f32[8,1], index: 4, kind: input, shape index: {}]
  %s5 = inlined_call_operand.vmem [shape: f32[8,1], index: 5, kind: input, shape index: {}]
  %s6 = inlined_call_operand.vmem [shape: f32[8,1], index: 6, kind: input, shape index: {}]
  %s7 = inlined_call_operand.vmem [shape: f32[8,1], index: 7, kind: input, shape index: {}]
  %s8 = inlined_call_operand.vmem [shape: f32[8,1], index: 8, kind: input, shape index: {}]
  %s9 = inlined_call_operand.vmem [shape: f32[8,1], index: 9, kind: input, shape index: {}]
  %s10 = inlined_call_operand.vmem [shape: f32[8,1], index: 10, kind: input, shape index: {}]
  %s11 = inlined_call_operand.vmem [shape: f32[8,1], index: 11, kind: input, shape index: {}]
  %s12 = inlined_call_operand.vmem [shape: f32[8,256], index: 12, kind: output, shape index: {}]
  %s13 = sld [smem:[#allocation0]]
  $region81: #{cumulator_forward.1} parent=0
    _
  %s15 = ssub.s32 1, %s13
  %s16 = scalar_select 0, %s15, %s13
  loop: start=0, step=1, limit=4
  $region2: #{cumulator_forward.1} parent=0 // loop_pre_header
    _
  $region3: #{cumulator_forward.1} parent=0 // loop_header
    %s18 = sphi 0, %s22
    %p19 = scmp.ge.s32.totalorder %s18, 4
    %s25 = sphi 0, %s37
    %s26 = sphi 0, %s33
    %s27 = sphi 0, %s25
    %s28 = sphi 0, %s26
    %s29 = sphi 0, %s27
    %s30 = sphi 0, %s28
    %s42 = sphi 0, %s44
    %s45 = sphi 0, %s42
    %s46 = sphi 0, %s45
    %s62 = sphi 0, %s46
    %s68 = sphi 0, %s70
    %s71 = sphi 0, %s68
    %s72 = sphi 0, %s71
    %s88 = sphi 0, %s72
    %s94 = sphi 0, %s96
    %s97 = sphi 0, %s94
    %s98 = sphi 0, %s97
    %s114 = sphi 0, %s98
    %s120 = sphi 0, %s122
    %s123 = sphi 0, %s120
    %s124 = sphi 0, %s123
    %s140 = sphi 0, %s124
    %s146 = sphi 0, %s148
    %s149 = sphi 0, %s146
    %s150 = sphi 0, %s149
    %s166 = sphi 0, %s150
    %s172 = sphi 0, %s174
    %s175 = sphi 0, %s172
    %s176 = sphi 0, %s175
    %s192 = sphi 0, %s176
    %s198 = sphi 0, %s200
    %s201 = sphi 0, %s198
    %s202 = sphi 0, %s201
    %s218 = sphi 0, %s202
    %s224 = sphi 0, %s226
    %s227 = sphi 0, %s224
    %s228 = sphi 0, %s227
    %s244 = sphi 0, %s228
    %s250 = sphi 0, %s252
    %s253 = sphi 0, %s250
    %s254 = sphi 0, %s253
    %s270 = sphi 0, %s254
    %s276 = sphi 0, %s278
    %s279 = sphi 0, %s276
    %s280 = sphi 0, %s279
    %s296 = sphi 0, %s280
    %s302 = sphi 0, %s304
    %s305 = sphi 0, %s302
    %s306 = sphi 0, %s305
    %s322 = sphi 0, %s306
    %s328 = sphi 0, %s330
    %s331 = sphi 0, %s328
    %s332 = sphi 0, %s331
    %s348 = sphi 0, %s332
    %s356 = sphi 0, %s358
    %s359 = sphi 0, %s356
    %s360 = sphi 0, %s359
    %s376 = sphi 0, %s360
  $region4: #{cumulator_forward.1} parent=0 // loop_header_branch
    %21 = sbr.rel (%p19) target = $region8
  $region5: #{cumulator_forward.1} parent=0 // loop_body
    %s23 = ssub.s32 %s18, 1
    %s24 = ssub.s32 %s18, 2
    %s31 = sadd.s32 1, %s26
    %p32 = scmp.ge.s32.totalorder %s31, 2
    %s33 = scalar_select %p32, 0, %s31
    %s34 = sadd.s32 1, %s25
    %s35 = scalar_select %p32, %s34, %s25
    %p36 = scmp.ge.s32.totalorder %s35, 1
    %s37 = scalar_select %p36, 0, %s35
    %s38 = ssub.s32 %s25, %s37
    %s39 = ssub.s32 %s26, %s33
    %s40 = sor.u32 %s38, %s39
    %p41 = scmp.eq.s32.totalorder %s40, 0
    %s43 = sadd.s32 %s42, 1
    %s44 = scalar_select %p41, %s42, %s43
    %p47 = pneg %p41
    %p48 = scmp.eq.s32.totalorder %s18, 1
    %p49 = por %p47, %p48
    %p50 = scmp.ne.s32.totalorder %s42, %s45
    %p51 = scmp.eq.s32.totalorder %s18, 0
    %p52 = por %p50, %p51
    %p53 = scmp.ne.s32.totalorder %s42, %s45
    %p54 = scmp.eq.s32.totalorder %s23, 1
    %p55 = por %p53, %p54
    %p56 = scmp.ne.s32.totalorder %s45, %s46
    %p57 = scmp.eq.s32.totalorder %s23, 0
    %p58 = por %p56, %p57
    %p59 = scmp.ne.s32.totalorder %s45, %s46
    %p60 = scmp.eq.s32.totalorder %s24, 1
    %p61 = por %p59, %p60
    %p63 = scmp.ne.s32.totalorder %s46, %s62
    %p64 = scmp.eq.s32.totalorder %s24, 0
    %p65 = por %p63, %p64
    %s66 = ssub.s32 %s25, %s37
    %p67 = scmp.eq.s32.totalorder %s66, 0
    %s69 = sadd.s32 %s68, 1
    %s70 = scalar_select %p67, %s68, %s69
    %p73 = pneg %p67
    %p74 = scmp.eq.s32.totalorder %s18, 1
    %p75 = por %p73, %p74
    %p76 = scmp.ne.s32.totalorder %s68, %s71
    %p77 = scmp.eq.s32.totalorder %s18, 0
    %p78 = por %p76, %p77
    %p79 = scmp.ne.s32.totalorder %s68, %s71
    %p80 = scmp.eq.s32.totalorder %s23, 1
    %p81 = por %p79, %p80
    %p82 = scmp.ne.s32.totalorder %s71, %s72
    %p83 = scmp.eq.s32.totalorder %s23, 0
    %p84 = por %p82, %p83
    %p85 = scmp.ne.s32.totalorder %s71, %s72
    %p86 = scmp.eq.s32.totalorder %s24, 1
    %p87 = por %p85, %p86
    %p89 = scmp.ne.s32.totalorder %s72, %s88
    %p90 = scmp.eq.s32.totalorder %s24, 0
    %p91 = por %p89, %p90
    %s92 = ssub.s32 %s25, %s37
    %p93 = scmp.eq.s32.totalorder %s92, 0
    %s95 = sadd.s32 %s94, 1
    %s96 = scalar_select %p93, %s94, %s95
    %p99 = pneg %p93
    %p100 = scmp.eq.s32.totalorder %s18, 1
    %p101 = por %p99, %p100
    %p102 = scmp.ne.s32.totalorder %s94, %s97
    %p103 = scmp.eq.s32.totalorder %s18, 0
    %p104 = por %p102, %p103
    %p105 = scmp.ne.s32.totalorder %s94, %s97
    %p106 = scmp.eq.s32.totalorder %s23, 1
    %p107 = por %p105, %p106
    %p108 = scmp.ne.s32.totalorder %s97, %s98
    %p109 = scmp.eq.s32.totalorder %s23, 0
    %p110 = por %p108, %p109
    %p111 = scmp.ne.s32.totalorder %s97, %s98
    %p112 = scmp.eq.s32.totalorder %s24, 1
    %p113 = por %p111, %p112
    %p115 = scmp.ne.s32.totalorder %s98, %s114
    %p116 = scmp.eq.s32.totalorder %s24, 0
    %p117 = por %p115, %p116
    %s118 = ssub.s32 %s25, %s37
    %p119 = scmp.eq.s32.totalorder %s118, 0
    %s121 = sadd.s32 %s120, 1
    %s122 = scalar_select %p119, %s120, %s121
    %p125 = pneg %p119
    %p126 = scmp.eq.s32.totalorder %s18, 1
    %p127 = por %p125, %p126
    %p128 = scmp.ne.s32.totalorder %s120, %s123
    %p129 = scmp.eq.s32.totalorder %s18, 0
    %p130 = por %p128, %p129
    %p131 = scmp.ne.s32.totalorder %s120, %s123
    %p132 = scmp.eq.s32.totalorder %s23, 1
    %p133 = por %p131, %p132
    %p134 = scmp.ne.s32.totalorder %s123, %s124
    %p135 = scmp.eq.s32.totalorder %s23, 0
    %p136 = por %p134, %p135
    %p137 = scmp.ne.s32.totalorder %s123, %s124
    %p138 = scmp.eq.s32.totalorder %s24, 1
    %p139 = por %p137, %p138
    %p141 = scmp.ne.s32.totalorder %s124, %s140
    %p142 = scmp.eq.s32.totalorder %s24, 0
    %p143 = por %p141, %p142
    %s144 = ssub.s32 %s25, %s37
    %p145 = scmp.eq.s32.totalorder %s144, 0
    %s147 = sadd.s32 %s146, 1
    %s148 = scalar_select %p145, %s146, %s147
    %p151 = pneg %p145
    %p152 = scmp.eq.s32.totalorder %s18, 1
    %p153 = por %p151, %p152
    %p154 = scmp.ne.s32.totalorder %s146, %s149
    %p155 = scmp.eq.s32.totalorder %s18, 0
    %p156 = por %p154, %p155
    %p157 = scmp.ne.s32.totalorder %s146, %s149
    %p158 = scmp.eq.s32.totalorder %s23, 1
    %p159 = por %p157, %p158
    %p160 = scmp.ne.s32.totalorder %s149, %s150
    %p161 = scmp.eq.s32.totalorder %s23, 0
    %p162 = por %p160, %p161
    %p163 = scmp.ne.s32.totalorder %s149, %s150
    %p164 = scmp.eq.s32.totalorder %s24, 1
    %p165 = por %p163, %p164
    %p167 = scmp.ne.s32.totalorder %s150, %s166
    %p168 = scmp.eq.s32.totalorder %s24, 0
    %p169 = por %p167, %p168
    %s170 = ssub.s32 %s25, %s37
    %p171 = scmp.eq.s32.totalorder %s170, 0
    %s173 = sadd.s32 %s172, 1
    %s174 = scalar_select %p171, %s172, %s173
    %p177 = pneg %p171
    %p178 = scmp.eq.s32.totalorder %s18, 1
    %p179 = por %p177, %p178
    %p180 = scmp.ne.s32.totalorder %s172, %s175
    %p181 = scmp.eq.s32.totalorder %s18, 0
    %p182 = por %p180, %p181
    %p183 = scmp.ne.s32.totalorder %s172, %s175
    %p184 = scmp.eq.s32.totalorder %s23, 1
    %p185 = por %p183, %p184
    %p186 = scmp.ne.s32.totalorder %s175, %s176
    %p187 = scmp.eq.s32.totalorder %s23, 0
    %p188 = por %p186, %p187
    %p189 = scmp.ne.s32.totalorder %s175, %s176
    %p190 = scmp.eq.s32.totalorder %s24, 1
    %p191 = por %p189, %p190
    %p193 = scmp.ne.s32.totalorder %s176, %s192
    %p194 = scmp.eq.s32.totalorder %s24, 0
    %p195 = por %p193, %p194
    %s196 = ssub.s32 %s25, %s37
    %p197 = scmp.eq.s32.totalorder %s196, 0
    %s199 = sadd.s32 %s198, 1
    %s200 = scalar_select %p197, %s198, %s199
    %p203 = pneg %p197
    %p204 = scmp.eq.s32.totalorder %s18, 1
    %p205 = por %p203, %p204
    %p206 = scmp.ne.s32.totalorder %s198, %s201
    %p207 = scmp.eq.s32.totalorder %s18, 0
    %p208 = por %p206, %p207
    %p209 = scmp.ne.s32.totalorder %s198, %s201
    %p210 = scmp.eq.s32.totalorder %s23, 1
    %p211 = por %p209, %p210
    %p212 = scmp.ne.s32.totalorder %s201, %s202
    %p213 = scmp.eq.s32.totalorder %s23, 0
    %p214 = por %p212, %p213
    %p215 = scmp.ne.s32.totalorder %s201, %s202
    %p216 = scmp.eq.s32.totalorder %s24, 1
    %p217 = por %p215, %p216
    %p219 = scmp.ne.s32.totalorder %s202, %s218
    %p220 = scmp.eq.s32.totalorder %s24, 0
    %p221 = por %p219, %p220
    %s222 = ssub.s32 %s25, %s37
    %p223 = scmp.eq.s32.totalorder %s222, 0
    %s225 = sadd.s32 %s224, 1
    %s226 = scalar_select %p223, %s224, %s225
    %p229 = pneg %p223
    %p230 = scmp.eq.s32.totalorder %s18, 1
    %p231 = por %p229, %p230
    %p232 = scmp.ne.s32.totalorder %s224, %s227
    %p233 = scmp.eq.s32.totalorder %s18, 0
    %p234 = por %p232, %p233
    %p235 = scmp.ne.s32.totalorder %s224, %s227
    %p236 = scmp.eq.s32.totalorder %s23, 1
    %p237 = por %p235, %p236
    %p238 = scmp.ne.s32.totalorder %s227, %s228
    %p239 = scmp.eq.s32.totalorder %s23, 0
    %p240 = por %p238, %p239
    %p241 = scmp.ne.s32.totalorder %s227, %s228
    %p242 = scmp.eq.s32.totalorder %s24, 1
    %p243 = por %p241, %p242
    %p245 = scmp.ne.s32.totalorder %s228, %s244
    %p246 = scmp.eq.s32.totalorder %s24, 0
    %p247 = por %p245, %p246
    %s248 = ssub.s32 %s25, %s37
    %p249 = scmp.eq.s32.totalorder %s248, 0
    %s251 = sadd.s32 %s250, 1
    %s252 = scalar_select %p249, %s250, %s251
    %p255 = pneg %p249
    %p256 = scmp.eq.s32.totalorder %s18, 1
    %p257 = por %p255, %p256
    %p258 = scmp.ne.s32.totalorder %s250, %s253
    %p259 = scmp.eq.s32.totalorder %s18, 0
    %p260 = por %p258, %p259
    %p261 = scmp.ne.s32.totalorder %s250, %s253
    %p262 = scmp.eq.s32.totalorder %s23, 1
    %p263 = por %p261, %p262
    %p264 = scmp.ne.s32.totalorder %s253, %s254
    %p265 = scmp.eq.s32.totalorder %s23, 0
    %p266 = por %p264, %p265
    %p267 = scmp.ne.s32.totalorder %s253, %s254
    %p268 = scmp.eq.s32.totalorder %s24, 1
    %p269 = por %p267, %p268
    %p271 = scmp.ne.s32.totalorder %s254, %s270
    %p272 = scmp.eq.s32.totalorder %s24, 0
    %p273 = por %p271, %p272
    %s274 = ssub.s32 %s25, %s37
    %p275 = scmp.eq.s32.totalorder %s274, 0
    %s277 = sadd.s32 %s276, 1
    %s278 = scalar_select %p275, %s276, %s277
    %p281 = pneg %p275
    %p282 = scmp.eq.s32.totalorder %s18, 1
    %p283 = por %p281, %p282
    %p284 = scmp.ne.s32.totalorder %s276, %s279
    %p285 = scmp.eq.s32.totalorder %s18, 0
    %p286 = por %p284, %p285
    %p287 = scmp.ne.s32.totalorder %s276, %s279
    %p288 = scmp.eq.s32.totalorder %s23, 1
    %p289 = por %p287, %p288
    %p290 = scmp.ne.s32.totalorder %s279, %s280
    %p291 = scmp.eq.s32.totalorder %s23, 0
    %p292 = por %p290, %p291
    %p293 = scmp.ne.s32.totalorder %s279, %s280
    %p294 = scmp.eq.s32.totalorder %s24, 1
    %p295 = por %p293, %p294
    %p297 = scmp.ne.s32.totalorder %s280, %s296
    %p298 = scmp.eq.s32.totalorder %s24, 0
    %p299 = por %p297, %p298
    %s300 = ssub.s32 %s25, %s37
    %p301 = scmp.eq.s32.totalorder %s300, 0
    %s303 = sadd.s32 %s302, 1
    %s304 = scalar_select %p301, %s302, %s303
    %p307 = pneg %p301
    %p308 = scmp.eq.s32.totalorder %s18, 1
    %p309 = por %p307, %p308
    %p310 = scmp.ne.s32.totalorder %s302, %s305
    %p311 = scmp.eq.s32.totalorder %s18, 0
    %p312 = por %p310, %p311
    %p313 = scmp.ne.s32.totalorder %s302, %s305
    %p314 = scmp.eq.s32.totalorder %s23, 1
    %p315 = por %p313, %p314
    %p316 = scmp.ne.s32.totalorder %s305, %s306
    %p317 = scmp.eq.s32.totalorder %s23, 0
    %p318 = por %p316, %p317
    %p319 = scmp.ne.s32.totalorder %s305, %s306
    %p320 = scmp.eq.s32.totalorder %s24, 1
    %p321 = por %p319, %p320
    %p323 = scmp.ne.s32.totalorder %s306, %s322
    %p324 = scmp.eq.s32.totalorder %s24, 0
    %p325 = por %p323, %p324
    %s326 = ssub.s32 %s25, %s37
    %p327 = scmp.eq.s32.totalorder %s326, 0
    %s329 = sadd.s32 %s328, 1
    %s330 = scalar_select %p327, %s328, %s329
    %p333 = pneg %p327
    %p334 = scmp.eq.s32.totalorder %s18, 1
    %p335 = por %p333, %p334
    %p336 = scmp.ne.s32.totalorder %s328, %s331
    %p337 = scmp.eq.s32.totalorder %s18, 0
    %p338 = por %p336, %p337
    %p339 = scmp.ne.s32.totalorder %s328, %s331
    %p340 = scmp.eq.s32.totalorder %s23, 1
    %p341 = por %p339, %p340
    %p342 = scmp.ne.s32.totalorder %s331, %s332
    %p343 = scmp.eq.s32.totalorder %s23, 0
    %p344 = por %p342, %p343
    %p345 = scmp.ne.s32.totalorder %s331, %s332
    %p346 = scmp.eq.s32.totalorder %s24, 1
    %p347 = por %p345, %p346
    %p349 = scmp.ne.s32.totalorder %s332, %s348
    %p350 = scmp.eq.s32.totalorder %s24, 0
    %p351 = por %p349, %p350
    %s352 = ssub.s32 %s25, %s37
    %s353 = ssub.s32 %s26, %s33
    %s354 = sor.u32 %s352, %s353
    %p355 = scmp.eq.s32.totalorder %s354, 0
    %s357 = sadd.s32 %s356, 1
    %s358 = scalar_select %p355, %s356, %s357
    %p361 = pneg %p355
    %p362 = scmp.eq.s32.totalorder %s18, 1
    %p363 = por %p361, %p362
    %p364 = scmp.ne.s32.totalorder %s356, %s359
    %p365 = scmp.eq.s32.totalorder %s18, 0
    %p366 = por %p364, %p365
    %p367 = scmp.ne.s32.totalorder %s356, %s359
    %p368 = scmp.eq.s32.totalorder %s23, 1
    %p369 = por %p367, %p368
    %p370 = scmp.ne.s32.totalorder %s359, %s360
    %p371 = scmp.eq.s32.totalorder %s23, 0
    %p372 = por %p370, %p371
    %p373 = scmp.ne.s32.totalorder %s359, %s360
    %p374 = scmp.eq.s32.totalorder %s24, 1
    %p375 = por %p373, %p374
    %p377 = scmp.ne.s32.totalorder %s360, %s376
    %p378 = scmp.eq.s32.totalorder %s24, 0
    %p379 = por %p377, %p378
    %p380 = scmp.le.s32.totalorder 1, %s18
    %p381 = scmp.lt.s32.totalorder %s18, 3
    %p382 = pnand %p380, %p381
    %p383 = pneg %p382
    // Predicated region
    $region9: #{cumulator_forward.1} parent=5 // pred_check
      _
    $region10: #{cumulator_forward.1} parent=5 // pred_check_branch
      %385 = sbr.rel (%p382) target = $region12
    $region11: #{cumulator_forward.1} parent=5 // pred_region
      %s386 = ssub.s32 %s18, 1
      // Predicated region
      $region13: #{cumulator_forward.1} parent=11 // pred_check
        %p387 = pneg %p84
      $region14: #{cumulator_forward.1} parent=11 // pred_check_branch
        %389 = sbr.rel (%p387) target = $region16
      $region15: #{cumulator_forward.1} parent=11 // pred_region
        %p390 = scmp.lt.s32.totalorder %s27, 0
        %s391 = scalar_select %p390, %s27, 0
        %s392 = smul.addr %s391, 8
        %s393 = scalar_lea.vmem %s1, %s392
      $region16: #{cumulator_forward.1} parent=11 // pred_fallthru
        _
      // Predicated region
      $region17: #{cumulator_forward.1} parent=11 // pred_check
        %p394 = pneg %p110
      $region18: #{cumulator_forward.1} parent=11 // pred_check_branch
        %396 = sbr.rel (%p394) target = $region20
      $region19: #{cumulator_forward.1} parent=11 // pred_region
        %p397 = scmp.lt.s32.totalorder %s27, 0
        %s398 = scalar_select %p397, %s27, 0
        %s399 = smul.addr %s398, 8
        %s400 = scalar_lea.vmem %s2, %s399
      $region20: #{cumulator_forward.1} parent=11 // pred_fallthru
        _
      // Predicated region
      $region21: #{cumulator_forward.1} parent=11 // pred_check
        %p401 = pneg %p136
      $region22: #{cumulator_forward.1} parent=11 // pred_check_branch
        %403 = sbr.rel (%p401) target = $region24
      $region23: #{cumulator_forward.1} parent=11 // pred_region
        %p404 = scmp.lt.s32.totalorder %s27, 0
        %s405 = scalar_select %p404, %s27, 0
        %s406 = smul.addr %s405, 8
        %s407 = scalar_lea.vmem %s3, %s406
      $region24: #{cumulator_forward.1} parent=11 // pred_fallthru
        _
      // Predicated region
      $region25: #{cumulator_forward.1} parent=11 // pred_check
        %p408 = pneg %p162
      $region26: #{cumulator_forward.1} parent=11 // pred_check_branch
        %410 = sbr.rel (%p408) target = $region28
      $region27: #{cumulator_forward.1} parent=11 // pred_region
        %p411 = scmp.lt.s32.totalorder %s27, 0
        %s412 = scalar_select %p411, %s27, 0
        %s413 = smul.addr %s412, 8
        %s414 = scalar_lea.vmem %s4, %s413
      $region28: #{cumulator_forward.1} parent=11 // pred_fallthru
        _
      // Predicated region
      $region29: #{cumulator_forward.1} parent=11 // pred_check
        %p415 = pneg %p188
      $region30: #{cumulator_forward.1} parent=11 // pred_check_branch
        %417 = sbr.rel (%p415) target = $region32
      $region31: #{cumulator_forward.1} parent=11 // pred_region
        %p418 = scmp.lt.s32.totalorder %s27, 0
        %s419 = scalar_select %p418, %s27, 0
        %s420 = smul.addr %s419, 8
        %s421 = scalar_lea.vmem %s5, %s420
      $region32: #{cumulator_forward.1} parent=11 // pred_fallthru
        _
      // Predicated region
      $region33: #{cumulator_forward.1} parent=11 // pred_check
        %p422 = pneg %p214
      $region34: #{cumulator_forward.1} parent=11 // pred_check_branch
        %424 = sbr.rel (%p422) target = $region36
      $region35: #{cumulator_forward.1} parent=11 // pred_region
        %p425 = scmp.lt.s32.totalorder %s27, 0
        %s426 = scalar_select %p425, %s27, 0
        %s427 = smul.addr %s426, 8
        %s428 = scalar_lea.vmem %s6, %s427
      $region36: #{cumulator_forward.1} parent=11 // pred_fallthru
        _
      // Predicated region
      $region37: #{cumulator_forward.1} parent=11 // pred_check
        %p429 = pneg %p240
      $region38: #{cumulator_forward.1} parent=11 // pred_check_branch
        %431 = sbr.rel (%p429) target = $region40
      $region39: #{cumulator_forward.1} parent=11 // pred_region
        %p432 = scmp.lt.s32.totalorder %s27, 0
        %s433 = scalar_select %p432, %s27, 0
        %s434 = smul.addr %s433, 8
        %s435 = scalar_lea.vmem %s7, %s434
      $region40: #{cumulator_forward.1} parent=11 // pred_fallthru
        _
      // Predicated region
      $region41: #{cumulator_forward.1} parent=11 // pred_check
        %p436 = pneg %p266
      $region42: #{cumulator_forward.1} parent=11 // pred_check_branch
        %438 = sbr.rel (%p436) target = $region44
      $region43: #{cumulator_forward.1} parent=11 // pred_region
        %p439 = scmp.lt.s32.totalorder %s27, 0
        %s440 = scalar_select %p439, %s27, 0
        %s441 = smul.addr %s440, 8
        %s442 = scalar_lea.vmem %s8, %s441
      $region44: #{cumulator_forward.1} parent=11 // pred_fallthru
        _
      // Predicated region
      $region45: #{cumulator_forward.1} parent=11 // pred_check
        %p443 = pneg %p292
      $region46: #{cumulator_forward.1} parent=11 // pred_check_branch
        %445 = sbr.rel (%p443) target = $region48
      $region47: #{cumulator_forward.1} parent=11 // pred_region
        %p446 = scmp.lt.s32.totalorder %s27, 0
        %s447 = scalar_select %p446, %s27, 0
        %s448 = smul.addr %s447, 8
        %s449 = scalar_lea.vmem %s9, %s448
      $region48: #{cumulator_forward.1} parent=11 // pred_fallthru
        _
      // Predicated region
      $region49: #{cumulator_forward.1} parent=11 // pred_check
        %p450 = pneg %p318
      $region50: #{cumulator_forward.1} parent=11 // pred_check_branch
        %452 = sbr.rel (%p450) target = $region52
      $region51: #{cumulator_forward.1} parent=11 // pred_region
        %p453 = scmp.lt.s32.totalorder %s27, 0
        %s454 = scalar_select %p453, %s27, 0
        %s455 = smul.addr %s454, 8
        %s456 = scalar_lea.vmem %s10, %s455
      $region52: #{cumulator_forward.1} parent=11 // pred_fallthru
        _
      // Predicated region
      $region53: #{cumulator_forward.1} parent=11 // pred_check
        %p457 = pneg %p344
      $region54: #{cumulator_forward.1} parent=11 // pred_check_branch
        %459 = sbr.rel (%p457) target = $region56
      $region55: #{cumulator_forward.1} parent=11 // pred_region
        %p460 = scmp.lt.s32.totalorder %s27, 0
        %s461 = scalar_select %p460, %s27, 0
        %s462 = smul.addr %s461, 8
        %s463 = scalar_lea.vmem %s11, %s462
      $region56: #{cumulator_forward.1} parent=11 // pred_fallthru
        _
    $region12: #{cumulator_forward.1} parent=5 // pred_fallthru
      _
    %p464 = scmp.lt.s32.totalorder %s18, 2
    // Predicated region
    $region57: #{cumulator_forward.1} parent=5 // pred_check
      %p465 = pneg %p464
    $region58: #{cumulator_forward.1} parent=5 // pred_check_branch
      %467 = sbr.rel (%p465) target = $region60
    $region59: #{cumulator_forward.1} parent=5 // pred_region
      // Predicated region
      $region61: #{cumulator_forward.1} parent=59 // pred_check
        %p468 = pneg %p52
      $region62: #{cumulator_forward.1} parent=59 // pred_check_branch
        %470 = sbr.rel (%p468) target = $region64
      $region63: #{cumulator_forward.1} parent=59 // pred_region
        %p471 = scmp.lt.s32.totalorder %s25, 0
        %s472 = scalar_select %p471, %s25, 0
        %p473 = scmp.lt.s32.totalorder %s26, 1
        %s474 = scalar_select %p473, %s26, 1
        %s475 = smul.addr %s472, 2
        %s476 = sadd.s32 %s474, %s475
        %s477 = smul.addr %s476, 8
        %s478 = scalar_lea.vmem %s0, %s477
      $region64: #{cumulator_forward.1} parent=59 // pred_fallthru
        _
    $region60: #{cumulator_forward.1} parent=5 // pred_fallthru
      _
    %p479 = scmp.le.s32.totalorder 1, %s18
    %p480 = scmp.lt.s32.totalorder %s18, 3
    %p481 = pnand %p479, %p480
    %p482 = pneg %p481
    // Predicated region
    $region65: #{cumulator_forward.1} parent=5 // pred_check
      _
    $region66: #{cumulator_forward.1} parent=5 // pred_check_branch
      %484 = sbr.rel (%p481) target = $region68
    $region67: #{cumulator_forward.1} parent=5 // pred_region
      %s485 = ssub.s32 %s18, 1
      %p486 = scmp.lt.s32.totalorder %s27, 0
      %s487 = scalar_select %p486, %s27, 0
      %p488 = scmp.lt.s32.totalorder %s28, 1
      %s489 = scalar_select %p488, %s28, 1
      %s490 = smul.addr %s487, 2
      %s491 = sadd.s32 %s489, %s490
      %s492 = smul.addr %s491, 8
      %s493 = scalar_lea.vmem %s0, %s492
      %p494 = pneg %p58
      %p495 = pneg %p55
      %p496 = scmp.lt.s32.totalorder %s27, 0
      %s497 = scalar_select %p496, %s27, 0
      %s498 = smul.addr %s497, 8
      %s499 = scalar_lea.vmem %s1, %s498
      %p500 = pneg %p84
      %p501 = pneg %p81
      %p502 = scmp.lt.s32.totalorder %s27, 0
      %s503 = scalar_select %p502, %s27, 0
      %s504 = smul.addr %s503, 8
      %s505 = scalar_lea.vmem %s2, %s504
      %p506 = pneg %p110
      %p507 = pneg %p107
      %p508 = scmp.lt.s32.totalorder %s27, 0
      %s509 = scalar_select %p508, %s27, 0
      %s510 = smul.addr %s509, 8
      %s511 = scalar_lea.vmem %s3, %s510
      %p512 = pneg %p136
      %p513 = pneg %p133
      %p514 = scmp.lt.s32.totalorder %s27, 0
      %s515 = scalar_select %p514, %s27, 0
      %s516 = smul.addr %s515, 8
      %s517 = scalar_lea.vmem %s4, %s516
      %p518 = pneg %p162
      %p519 = pneg %p159
      %p520 = scmp.lt.s32.totalorder %s27, 0
      %s521 = scalar_select %p520, %s27, 0
      %s522 = smul.addr %s521, 8
      %s523 = scalar_lea.vmem %s5, %s522
      %p524 = pneg %p188
      %p525 = pneg %p185
      %p526 = scmp.lt.s32.totalorder %s27, 0
      %s527 = scalar_select %p526, %s27, 0
      %s528 = smul.addr %s527, 8
      %s529 = scalar_lea.vmem %s6, %s528
      %p530 = pneg %p214
      %p531 = pneg %p211
      %p532 = scmp.lt.s32.totalorder %s27, 0
      %s533 = scalar_select %p532, %s27, 0
      %s534 = smul.addr %s533, 8
      %s535 = scalar_lea.vmem %s7, %s534
      %p536 = pneg %p240
      %p537 = pneg %p237
      %p538 = scmp.lt.s32.totalorder %s27, 0
      %s539 = scalar_select %p538, %s27, 0
      %s540 = smul.addr %s539, 8
      %s541 = scalar_lea.vmem %s8, %s540
      %p542 = pneg %p266
      %p543 = pneg %p263
      %p544 = scmp.lt.s32.totalorder %s27, 0
      %s545 = scalar_select %p544, %s27, 0
      %s546 = smul.addr %s545, 8
      %s547 = scalar_lea.vmem %s9, %s546
      %p548 = pneg %p292
      %p549 = pneg %p289
      %p550 = scmp.lt.s32.totalorder %s27, 0
      %s551 = scalar_select %p550, %s27, 0
      %s552 = smul.addr %s551, 8
      %s553 = scalar_lea.vmem %s10, %s552
      %p554 = pneg %p318
      %p555 = pneg %p315
      %p556 = scmp.lt.s32.totalorder %s27, 0
      %s557 = scalar_select %p556, %s27, 0
      %s558 = smul.addr %s557, 8
      %s559 = scalar_lea.vmem %s11, %s558
      %p560 = pneg %p344
      %p561 = pneg %p341
      %p562 = pneg %p372
      %p563 = pneg %p369
      %p564 = scmp.lt.s32.totalorder %s27, 0
      %s565 = scalar_select %p564, %s27, 0
      %p566 = scmp.lt.s32.totalorder %s28, 1
      %s567 = scalar_select %p566, %s28, 1
      %s568 = smul.addr %s565, 2
      %s569 = sadd.s32 %s567, %s568
      %s570 = smul.addr %s569, 8
      %s571 = scalar_lea.vmem %s12, %s570
      %p572 = scmp.lt.s32.totalorder %s27, 0
      %s573 = scalar_select %p572, %s27, 0
      %p574 = scmp.lt.s32.totalorder %s28, 1
      %s575 = scalar_select %p574, %s28, 1
      %s576 = smul.addr %s573, 2
      %s577 = sadd.s32 %s575, %s576
      %s578 = smul.addr %s577, 8
      %s579 = scalar_lea.vmem %s0, %s578
      %p580 = scmp.lt.s32.totalorder %s27, 0
      %s581 = scalar_select %p580, %s27, 0
      %s582 = smul.addr %s581, 8
      %s583 = scalar_lea.vmem %s1, %s582
      %p584 = scmp.lt.s32.totalorder %s27, 0
      %s585 = scalar_select %p584, %s27, 0
      %s586 = smul.addr %s585, 8
      %s587 = scalar_lea.vmem %s2, %s586
      %p588 = scmp.lt.s32.totalorder %s27, 0
      %s589 = scalar_select %p588, %s27, 0
      %s590 = smul.addr %s589, 8
      %s591 = scalar_lea.vmem %s3, %s590
      %p592 = scmp.lt.s32.totalorder %s27, 0
      %s593 = scalar_select %p592, %s27, 0
      %s594 = smul.addr %s593, 8
      %s595 = scalar_lea.vmem %s4, %s594
      %p596 = scmp.lt.s32.totalorder %s27, 0
      %s597 = scalar_select %p596, %s27, 0
      %s598 = smul.addr %s597, 8
      %s599 = scalar_lea.vmem %s5, %s598
      %p600 = scmp.lt.s32.totalorder %s27, 0
      %s601 = scalar_select %p600, %s27, 0
      %s602 = smul.addr %s601, 8
      %s603 = scalar_lea.vmem %s6, %s602
      %p604 = scmp.lt.s32.totalorder %s27, 0
      %s605 = scalar_select %p604, %s27, 0
      %s606 = smul.addr %s605, 8
      %s607 = scalar_lea.vmem %s7, %s606
      %p608 = scmp.lt.s32.totalorder %s27, 0
      %s609 = scalar_select %p608, %s27, 0
      %s610 = smul.addr %s609, 8
      %s611 = scalar_lea.vmem %s8, %s610
      %p612 = scmp.lt.s32.totalorder %s27, 0
      %s613 = scalar_select %p612, %s27, 0
      %s614 = smul.addr %s613, 8
      %s615 = scalar_lea.vmem %s9, %s614
      %p616 = scmp.lt.s32.totalorder %s27, 0
      %s617 = scalar_select %p616, %s27, 0
      %s618 = smul.addr %s617, 8
      %s619 = scalar_lea.vmem %s10, %s618
      %p620 = scmp.lt.s32.totalorder %s27, 0
      %s621 = scalar_select %p620, %s27, 0
      %s622 = smul.addr %s621, 8
      %s623 = scalar_lea.vmem %s11, %s622
      %p624 = scmp.lt.s32.totalorder %s27, 0
      %s625 = scalar_select %p624, %s27, 0
      %p626 = scmp.lt.s32.totalorder %s28, 1
      %s627 = scalar_select %p626, %s28, 1
      %s628 = smul.addr %s625, 2
      %s629 = sadd.s32 %s627, %s628
      %s630 = smul.addr %s629, 8
      %s631 = scalar_lea.vmem %s12, %s630
      %v632 = vld [vmem:[%s579] sm:$0xff]
      %v633 = vld [vmem:[%s583] sm:$0xff]
      %635 = vset.pattern.permute.xlu0 0
      %636 = vperm.xlu0 %635, %v633
      %v637 = vpop.permute.xlu0 %636
      %v639 = vmul.f32 %v637, %v632
      %v640 = vld [vmem:[%s587] sm:$0xff]
      %642 = vset.pattern.permute.xlu0 0
      %643 = vperm.xlu0 %642, %v640
      %v644 = vpop.permute.xlu0 %643
      %v646 = vadd.f32 %v639, %v644
      %v647 = vld [vmem:[%s591] sm:$0xff]
      %v648 = vtanh.pop %v646
      %650 = vset.pattern.permute.xlu0 0
      %651 = vperm.xlu0 %650, %v647
      %v652 = vpop.permute.xlu0 %651
      %v654 = vmul.f32 %v652, %v648
      %v655 = vadd.f32 %v646, %v654
      %v656 = vld [vmem:[%s595] sm:$0xff]
      %658 = vset.pattern.permute.xlu0 0
      %659 = vperm.xlu0 %658, %v656
      %v660 = vpop.permute.xlu0 %659
      %v662 = vmul.f32 %v660, %v655
      %v663 = vld [vmem:[%s599] sm:$0xff]
      %665 = vset.pattern.permute.xlu0 0
      %666 = vperm.xlu0 %665, %v663
      %v667 = vpop.permute.xlu0 %666
      %v669 = vadd.f32 %v662, %v667
      %v670 = vld [vmem:[%s603] sm:$0xff]
      %v671 = vtanh.pop %v669
      %673 = vset.pattern.permute.xlu0 0
      %674 = vperm.xlu0 %673, %v670
      %v675 = vpop.permute.xlu0 %674
      %v677 = vmul.f32 %v675, %v671
      %v678 = vadd.f32 %v669, %v677
      %v679 = vld [vmem:[%s607] sm:$0xff]
      %681 = vset.pattern.permute.xlu0 0
      %682 = vperm.xlu0 %681, %v679
      %v683 = vpop.permute.xlu0 %682
      %v685 = vmul.f32 %v683, %v678
      %v686 = vld [vmem:[%s611] sm:$0xff]
      %688 = vset.pattern.permute.xlu0 0
      %689 = vperm.xlu0 %688, %v686
      %v690 = vpop.permute.xlu0 %689
      %v692 = vadd.f32 %v685, %v690
      %v693 = vld [vmem:[%s615] sm:$0xff]
      %v694 = vtanh.pop %v692
      %696 = vset.pattern.permute.xlu0 0
      %697 = vperm.xlu0 %696, %v693
      %v698 = vpop.permute.xlu0 %697
      %v700 = vmul.f32 %v698, %v694
      %v701 = vadd.f32 %v692, %v700
      %v702 = vld [vmem:[%s619] sm:$0xff]
      %704 = vset.pattern.permute.xlu0 0
      %705 = vperm.xlu0 %704, %v702
      %v706 = vpop.permute.xlu0 %705
      %v708 = vmul.f32 %v706, %v701
      %v709 = vld [vmem:[%s623] sm:$0xff]
      %711 = vset.pattern.permute.xlu0 0
      %712 = vperm.xlu0 %711, %v709
      %v713 = vpop.permute.xlu0 %712
      %v715 = vadd.f32 %v708, %v713
      %v716 = vxor.u32 %v715, 2147483648
      %v717 = vmul.f32 %v716, 1.442695
      %v718 = vpow.pop %v717
      %v719 = vadd.f32 %v718, 1.0
      %v720 = vrcp.pop %v719
      %v721 = vmul.f32 1.0, %v720
      %722 = vst [vmem:[%s631] sm:$0xff] %v721
      %p723 = scmp.lt.s32.totalorder %s27, 0
      %s724 = scalar_select %p723, %s27, 0
      %p725 = scmp.lt.s32.totalorder %s28, 1
      %s726 = scalar_select %p725, %s28, 1
      %s727 = smul.addr %s724, 2
      %s728 = sadd.s32 %s726, %s727
      %s729 = smul.addr %s728, 8
      %s730 = scalar_lea.vmem %s12, %s729
      // Predicated region
      $region69: #{cumulator_forward.1} parent=67 // pred_check
        %p731 = pneg %p369
      $region70: #{cumulator_forward.1} parent=67 // pred_check_branch
        %733 = sbr.rel (%p731) target = $region72
      $region71: #{cumulator_forward.1} parent=67 // pred_region
        _
      $region72: #{cumulator_forward.1} parent=67 // pred_fallthru
        _
    $region68: #{cumulator_forward.1} parent=5 // pred_fallthru
      _
    %p734 = scmp.le.s32.totalorder 2, %s18
    // Predicated region
    $region73: #{cumulator_forward.1} parent=5 // pred_check
      %p735 = pneg %p734
    $region74: #{cumulator_forward.1} parent=5 // pred_check_branch
      %737 = sbr.rel (%p735) target = $region76
    $region75: #{cumulator_forward.1} parent=5 // pred_region
      %s738 = ssub.s32 %s18, 2
      // Predicated region
      $region77: #{cumulator_forward.1} parent=75 // pred_check
        %p739 = pneg %p375
      $region78: #{cumulator_forward.1} parent=75 // pred_check_branch
        %741 = sbr.rel (%p739) target = $region80
      $region79: #{cumulator_forward.1} parent=75 // pred_region
        %p742 = scmp.lt.s32.totalorder %s29, 0
        %s743 = scalar_select %p742, %s29, 0
        %p744 = scmp.lt.s32.totalorder %s30, 1
        %s745 = scalar_select %p744, %s30, 1
        %s746 = smul.addr %s743, 2
        %s747 = sadd.s32 %s745, %s746
        %s748 = smul.addr %s747, 8
        %s749 = scalar_lea.vmem %s12, %s748
      $region80: #{cumulator_forward.1} parent=75 // pred_fallthru
        _
    $region76: #{cumulator_forward.1} parent=5 // pred_fallthru
      _
  $region6: #{cumulator_forward.1} parent=0 // loop_footer
    %s22 = sadd.s32 1, %s18
  $region7: #{cumulator_forward.1} parent=0 // loop_footer_branch
    %17 = sbr.rel target = $region3
  $region8: #{cumulator_forward.1} parent=0 // loop_exit
    _

</llo_original>
